<compile_context>
chip_gen: v6e
topology: v6e:2x2x1
jax: 0.10.0
libtpu: 0.0.40
codegen_flags: <defaults>
</compile_context>

<pallas_src>
import functools

import jax
import jax.numpy as jnp
from jax import lax
from jax.experimental import pallas as pl
from jax.experimental.pallas import tpu as pltpu

ROWS = 5         # fixed by the module: ppg.view(5, -1)
HALF_W = 5       # max_pool1d(width=11, stride=1, padding=5)
NEG_BIG = -1e30  # "-inf" signal value used as window-max padding


def _peak_loss_kernel(ppg_ref, rppg_ref, out_ref, *, seq_len, padded_len, fs):
    L, Lp = seq_len, padded_len
    pad = Lp - L                                    # >= HALF_W by construction
    f32 = jnp.float32

    # Shared (5, Lp) lane-index / validity masks, computed once for both signals.
    pos = lax.broadcasted_iota(jnp.int32, (ROWS, Lp), 1)
    valid = pos < L

    def ahead(a, k):                                # a[t + k]   (cyclic over Lp)
        return pltpu.roll(a, (-k) % Lp, 1)

    def back(a, k):                                 # a[t - k]   (cyclic over Lp)
        return pltpu.roll(a, k % Lp, 1)

    def row_hr(x_ref):
        """Per-row heart rate (5, 1) for one (5, Lp) signal block (lane pads are 0)."""
        x = x_ref[...].astype(f32)

        # --- per-row z-normalization over the real L samples -----------------
        # TODO(synk): normalize_torch is not defined in the source file; assumed
        # the standard per-signal z-score.  (The std scale factor is immaterial
        # for peak positions / the x > mean_pk/2 test; only the mean subtraction
        # matters, so biased vs unbiased std does not change the result.)
        mu = jnp.sum(x, axis=-1, keepdims=True) * (1.0 / L)   # pads are exactly 0
        xc = jnp.where(valid, x - mu, 0.0)
        var = jnp.sum(xc * xc, axis=-1, keepdims=True) * (1.0 / (L - 1))
        xn = jnp.where(valid, xc * lax.rsqrt(var + 1e-12), NEG_BIG)

        # --- centered width-11 window max: 4 rolls + 4 maxes -----------------
        r1 = jnp.maximum(xn, ahead(xn, 1))                              # k in {0,1}
        rmax = jnp.maximum(jnp.maximum(r1, ahead(r1, 2)), ahead(r1, 4))  # k in [0,5]
        wmax = jnp.maximum(rmax, back(rmax, 5))                          # k in [-5,5]

        # "nice peak": t is the max of its own centered window (ties kept; the
        # PyTorch return_indices picks a single index -- measure-zero difference).
        is_peak = jnp.logical_and(xn >= wmax, valid)
        is_peakf = is_peak.astype(f32)
        cnt = jnp.sum(is_peakf, axis=-1, keepdims=True)
        mean_pk = (jnp.sum(xn * is_peakf, axis=-1, keepdims=True)
                   / jnp.maximum(cnt, 1.0))                              # exact div
        keep = jnp.logical_and(is_peak, xn > 0.5 * mean_pk)
        m = jnp.sum(keep.astype(f32), axis=-1, keepdims=True)            # kept count

        # --- previous kept-peak position: int32 log-step prefix-max scan -----
        y = jnp.where(keep, pos, -1)
        d = 1
        while d < L:                               # unrolled at trace time
            shifted = back(y, d)
            if 2 * d - 1 <= pad:
                # Head-wrapped lanes still read the -1 pads -> guard not needed.
                y = jnp.maximum(y, shifted)
            else:
                y = jnp.where(pos >= d, jnp.maximum(y, shifted), y)
            d *= 2
        prev = jnp.where(pos >= 1, back(y, 1), -1)  # last kept peak strictly before t

        # sum over consecutive kept-peak pairs of 1 / (p_{k+1} - p_k)
        dt = (pos - prev).astype(f32)              # >= 1 everywhere by construction
        contrib = jnp.where(jnp.logical_and(keep, prev >= 0), 1.0 / dt, 0.0)
        sum_inv = jnp.sum(contrib, axis=-1, keepdims=True)               # (5, 1)

        # hr = mean(60 / (diff/fs)) = 60*fs * sum(1/diff) / n_intervals
        n_int = jnp.maximum(m - 1.0, 1.0)
        # TODO(synk): rows with <2 kept peaks give hr == 0 here; PyTorch would
        # produce nan (mean over an empty diff).  Guarded instead of nan.
        return (60.0 * fs) * sum_inv / n_int

    ppg_hr = row_hr(ppg_ref)                       # (5, 1)
    rppg_hr = row_hr(rppg_ref)                     # (5, 1)
    rel = jnp.abs(ppg_hr - rppg_hr) / jnp.maximum(ppg_hr, 1e-6)
    out_ref[...] = jnp.sum(rel, axis=0, keepdims=True) * (1.0 / ROWS)


def peak_detection_loss_pallas(rppg, ppg, fs=30, epoch=15):
    """Forward of PeakDetectionLoss.  `epoch` only selects alpha/beta, which do
    not affect the returned value (only hr_score is returned), so it is unused."""
    del epoch
    ppg2 = jnp.reshape(ppg, (ROWS, -1))
    rppg2 = jnp.reshape(rppg, (ROWS, -1))
    L = ppg2.shape[1]
    # Lane-pad to a multiple of 128 with pad >= HALF_W (window / scan edge handling).
    Lp = ((L + HALF_W + 127) // 128) * 128
    ppg2 = jnp.pad(ppg2, ((0, 0), (0, Lp - L)))     # original dtype; cast in-kernel
    rppg2 = jnp.pad(rppg2, ((0, 0), (0, Lp - L)))

    kernel = functools.partial(_peak_loss_kernel, seq_len=L, padded_len=Lp,
                               fs=float(fs))
    out = pl.pallas_call(
        kernel,
        out_shape=jax.ShapeDtypeStruct((1, 1), jnp.float32),
        in_specs=[pl.BlockSpec(memory_space=pltpu.MemorySpace.VMEM),
                  pl.BlockSpec(memory_space=pltpu.MemorySpace.VMEM)],
        out_specs=pl.BlockSpec(memory_space=pltpu.MemorySpace.VMEM),
    )(ppg2, rppg2)
    return out[0, 0]


if __name__ == "__main__":
    key = jax.random.PRNGKey(0)
    k1, k2 = jax.random.split(key)
    L = 256  # per-row length after .view(5, -1)
    fs = 30.0
    t = jnp.arange(ROWS * L, dtype=jnp.float32).reshape(ROWS, L)
    # pseudo-PPG / pseudo-rPPG: periodic pulses (~1.2 / 1.4 Hz at 30 fps) + noise
    ppg = jnp.sin(2.0 * jnp.pi * 1.2 / fs * t) + 0.1 * jax.random.normal(k1, (ROWS, L))
    rppg = jnp.sin(2.0 * jnp.pi * 1.4 / fs * t + 0.5) + 0.1 * jax.random.normal(k2, (ROWS, L))

    loss = peak_detection_loss_pallas(rppg, ppg, fs=30, epoch=15)
    jax.block_until_ready(loss)
    print("KERNEL_OK")
</pallas_src>

<mosaic_0001>
module attributes {stable_mosaic.version = 11 : i64} {
  func.func @_peak_loss_kernel(%arg0: memref<5x384xf32, #tpu.memory_space<vmem>>, %arg1: memref<5x384xf32, #tpu.memory_space<vmem>>, %arg2: memref<1x1xf32, #tpu.memory_space<vmem>>) attributes {dimension_semantics = [], scalar_prefetch = 0 : i64, scratch_operands = 0 : i64, tpu.core_type = #tpu.core_type<tc>} {
    %0 = tpu.iota {dimensions = array<i32: 1>} : vector<5x384xi32>
    %c256_i32 = arith.constant 256 : i32
    %1 = vector.broadcast %c256_i32 : i32 to vector<5x384xi32>
    %2 = arith.cmpi slt, %0, %1 : vector<5x384xi32>
    %c0 = arith.constant 0 : index
    %c0_0 = arith.constant 0 : index
    %3 = vector.load %arg0[%c0, %c0_0] : memref<5x384xf32, #tpu.memory_space<vmem>>, vector<5x384xf32>
    %cst = arith.constant dense<0.000000e+00> : vector<5xf32>
    %4 = vector.multi_reduction <add>, %3, %cst [1] : vector<5x384xf32> to vector<5xf32>
    %5 = vector.shape_cast %4 : vector<5xf32> to vector<5x1xf32>
    %cst_1 = arith.constant 3.906250e-03 : f32
    %6 = vector.broadcast %cst_1 : f32 to vector<5x1xf32>
    %7 = arith.mulf %5, %6 : vector<5x1xf32>
    %8 = vector.broadcast %7 : vector<5x1xf32> to vector<5x384xf32>
    %9 = arith.subf %3, %8 : vector<5x384xf32>
    %cst_2 = arith.constant 0.000000e+00 : f32
    %10 = vector.broadcast %cst_2 : f32 to vector<5x384xf32>
    %11 = arith.select %2, %9, %10 : vector<5x384xi1>, vector<5x384xf32>
    %12 = arith.mulf %11, %11 : vector<5x384xf32>
    %cst_3 = arith.constant dense<0.000000e+00> : vector<5xf32>
    %13 = vector.multi_reduction <add>, %12, %cst_3 [1] : vector<5x384xf32> to vector<5xf32>
    %14 = vector.shape_cast %13 : vector<5xf32> to vector<5x1xf32>
    %cst_4 = arith.constant 0.00392156886 : f32
    %15 = vector.broadcast %cst_4 : f32 to vector<5x1xf32>
    %16 = arith.mulf %14, %15 : vector<5x1xf32>
    %cst_5 = arith.constant 9.99999996E-13 : f32
    %17 = vector.broadcast %cst_5 : f32 to vector<5x1xf32>
    %18 = arith.addf %16, %17 : vector<5x1xf32>
    %19 = math.rsqrt %18 : vector<5x1xf32>
    %20 = vector.broadcast %19 : vector<5x1xf32> to vector<5x384xf32>
    %21 = arith.mulf %11, %20 : vector<5x384xf32>
    %cst_6 = arith.constant -1.000000e+30 : f32
    %22 = vector.broadcast %cst_6 : f32 to vector<5x384xf32>
    %23 = arith.select %2, %21, %22 : vector<5x384xi1>, vector<5x384xf32>
    %c383_i32 = arith.constant 383 : i32
    %24 = tpu.dynamic_rotate %23 by %c383_i32 dim 1 : vector<5x384xf32>, i32 -> vector<5x384xf32>
    %25 = arith.maximumf %23, %24 : vector<5x384xf32>
    %c382_i32 = arith.constant 382 : i32
    %26 = tpu.dynamic_rotate %25 by %c382_i32 dim 1 : vector<5x384xf32>, i32 -> vector<5x384xf32>
    %27 = arith.maximumf %25, %26 : vector<5x384xf32>
    %c380_i32 = arith.constant 380 : i32
    %28 = tpu.dynamic_rotate %25 by %c380_i32 dim 1 : vector<5x384xf32>, i32 -> vector<5x384xf32>
    %29 = arith.maximumf %27, %28 : vector<5x384xf32>
    %c5_i32 = arith.constant 5 : i32
    %30 = tpu.dynamic_rotate %29 by %c5_i32 dim 1 : vector<5x384xf32>, i32 -> vector<5x384xf32>
    %31 = arith.maximumf %29, %30 : vector<5x384xf32>
    %32 = arith.cmpf oge, %23, %31 : vector<5x384xf32>
    %33 = arith.andi %32, %2 : vector<5x384xi1>
    %34 = arith.extui %33 : vector<5x384xi1> to vector<5x384xi32>
    %35 = arith.sitofp %34 : vector<5x384xi32> to vector<5x384xf32>
    %cst_7 = arith.constant dense<0.000000e+00> : vector<5xf32>
    %36 = vector.multi_reduction <add>, %35, %cst_7 [1] : vector<5x384xf32> to vector<5xf32>
    %37 = vector.shape_cast %36 : vector<5xf32> to vector<5x1xf32>
    %38 = arith.mulf %23, %35 : vector<5x384xf32>
    %cst_8 = arith.constant dense<0.000000e+00> : vector<5xf32>
    %39 = vector.multi_reduction <add>, %38, %cst_8 [1] : vector<5x384xf32> to vector<5xf32>
    %40 = vector.shape_cast %39 : vector<5xf32> to vector<5x1xf32>
    %cst_9 = arith.constant 1.000000e+00 : f32
    %41 = vector.broadcast %cst_9 : f32 to vector<5x1xf32>
    %42 = arith.maximumf %37, %41 : vector<5x1xf32>
    %43 = arith.divf %40, %42 : vector<5x1xf32>
    %cst_10 = arith.constant 5.000000e-01 : f32
    %44 = vector.broadcast %cst_10 : f32 to vector<5x1xf32>
    %45 = arith.mulf %44, %43 : vector<5x1xf32>
    %46 = vector.broadcast %45 : vector<5x1xf32> to vector<5x384xf32>
    %47 = arith.cmpf ogt, %23, %46 : vector<5x384xf32>
    %48 = arith.andi %33, %47 : vector<5x384xi1>
    %49 = arith.extui %48 : vector<5x384xi1> to vector<5x384xi32>
    %50 = arith.sitofp %49 : vector<5x384xi32> to vector<5x384xf32>
    %cst_11 = arith.constant dense<0.000000e+00> : vector<5xf32>
    %51 = vector.multi_reduction <add>, %50, %cst_11 [1] : vector<5x384xf32> to vector<5xf32>
    %52 = vector.shape_cast %51 : vector<5xf32> to vector<5x1xf32>
    %c-1_i32 = arith.constant -1 : i32
    %53 = vector.broadcast %c-1_i32 : i32 to vector<5x384xi32>
    %54 = arith.select %48, %0, %53 : vector<5x384xi1>, vector<5x384xi32>
    %c1_i32 = arith.constant 1 : i32
    %55 = tpu.dynamic_rotate %54 by %c1_i32 dim 1 : vector<5x384xi32>, i32 -> vector<5x384xi32>
    %56 = arith.maxsi %54, %55 : vector<5x384xi32>
    %c2_i32 = arith.constant 2 : i32
    %57 = tpu.dynamic_rotate %56 by %c2_i32 dim 1 : vector<5x384xi32>, i32 -> vector<5x384xi32>
    %58 = arith.maxsi %56, %57 : vector<5x384xi32>
    %c4_i32 = arith.constant 4 : i32
    %59 = tpu.dynamic_rotate %58 by %c4_i32 dim 1 : vector<5x384xi32>, i32 -> vector<5x384xi32>
    %60 = arith.maxsi %58, %59 : vector<5x384xi32>
    %c8_i32 = arith.constant 8 : i32
    %61 = tpu.dynamic_rotate %60 by %c8_i32 dim 1 : vector<5x384xi32>, i32 -> vector<5x384xi32>
    %62 = arith.maxsi %60, %61 : vector<5x384xi32>
    %c16_i32 = arith.constant 16 : i32
    %63 = tpu.dynamic_rotate %62 by %c16_i32 dim 1 : vector<5x384xi32>, i32 -> vector<5x384xi32>
    %64 = arith.maxsi %62, %63 : vector<5x384xi32>
    %c32_i32 = arith.constant 32 : i32
    %65 = tpu.dynamic_rotate %64 by %c32_i32 dim 1 : vector<5x384xi32>, i32 -> vector<5x384xi32>
    %66 = arith.maxsi %64, %65 : vector<5x384xi32>
    %c64_i32 = arith.constant 64 : i32
    %67 = tpu.dynamic_rotate %66 by %c64_i32 dim 1 : vector<5x384xi32>, i32 -> vector<5x384xi32>
    %68 = arith.maxsi %66, %67 : vector<5x384xi32>
    %c128_i32 = arith.constant 128 : i32
    %69 = tpu.dynamic_rotate %68 by %c128_i32 dim 1 : vector<5x384xi32>, i32 -> vector<5x384xi32>
    %c128_i32_12 = arith.constant 128 : i32
    %70 = vector.broadcast %c128_i32_12 : i32 to vector<5x384xi32>
    %71 = arith.cmpi sge, %0, %70 : vector<5x384xi32>
    %72 = arith.maxsi %68, %69 : vector<5x384xi32>
    %73 = arith.select %71, %72, %68 : vector<5x384xi1>, vector<5x384xi32>
    %c1_i32_13 = arith.constant 1 : i32
    %74 = vector.broadcast %c1_i32_13 : i32 to vector<5x384xi32>
    %75 = arith.cmpi sge, %0, %74 : vector<5x384xi32>
    %c1_i32_14 = arith.constant 1 : i32
    %76 = tpu.dynamic_rotate %73 by %c1_i32_14 dim 1 : vector<5x384xi32>, i32 -> vector<5x384xi32>
    %c-1_i32_15 = arith.constant -1 : i32
    %77 = vector.broadcast %c-1_i32_15 : i32 to vector<5x384xi32>
    %78 = arith.select %75, %76, %77 : vector<5x384xi1>, vector<5x384xi32>
    %79 = arith.subi %0, %78 : vector<5x384xi32>
    %80 = arith.sitofp %79 : vector<5x384xi32> to vector<5x384xf32>
    %c0_i32 = arith.constant 0 : i32
    %81 = vector.broadcast %c0_i32 : i32 to vector<5x384xi32>
    %82 = arith.cmpi sge, %78, %81 : vector<5x384xi32>
    %83 = arith.andi %48, %82 : vector<5x384xi1>
    %cst_16 = arith.constant 1.000000e+00 : f32
    %84 = vector.broadcast %cst_16 : f32 to vector<5x384xf32>
    %85 = arith.divf %84, %80 : vector<5x384xf32>
    %cst_17 = arith.constant 0.000000e+00 : f32
    %86 = vector.broadcast %cst_17 : f32 to vector<5x384xf32>
    %87 = arith.select %83, %85, %86 : vector<5x384xi1>, vector<5x384xf32>
    %cst_18 = arith.constant dense<0.000000e+00> : vector<5xf32>
    %88 = vector.multi_reduction <add>, %87, %cst_18 [1] : vector<5x384xf32> to vector<5xf32>
    %89 = vector.shape_cast %88 : vector<5xf32> to vector<5x1xf32>
    %cst_19 = arith.constant 1.000000e+00 : f32
    %90 = vector.broadcast %cst_19 : f32 to vector<5x1xf32>
    %91 = arith.subf %52, %90 : vector<5x1xf32>
    %cst_20 = arith.constant 1.000000e+00 : f32
    %92 = vector.broadcast %cst_20 : f32 to vector<5x1xf32>
    %93 = arith.maximumf %91, %92 : vector<5x1xf32>
    %cst_21 = arith.constant 1.800000e+03 : f32
    %94 = vector.broadcast %cst_21 : f32 to vector<5x1xf32>
    %95 = arith.mulf %94, %89 : vector<5x1xf32>
    %96 = arith.divf %95, %93 : vector<5x1xf32>
    %c0_22 = arith.constant 0 : index
    %c0_23 = arith.constant 0 : index
    %97 = vector.load %arg1[%c0_22, %c0_23] : memref<5x384xf32, #tpu.memory_space<vmem>>, vector<5x384xf32>
    %cst_24 = arith.constant dense<0.000000e+00> : vector<5xf32>
    %98 = vector.multi_reduction <add>, %97, %cst_24 [1] : vector<5x384xf32> to vector<5xf32>
    %99 = vector.shape_cast %98 : vector<5xf32> to vector<5x1xf32>
    %cst_25 = arith.constant 3.906250e-03 : f32
    %100 = vector.broadcast %cst_25 : f32 to vector<5x1xf32>
    %101 = arith.mulf %99, %100 : vector<5x1xf32>
    %102 = vector.broadcast %101 : vector<5x1xf32> to vector<5x384xf32>
    %103 = arith.subf %97, %102 : vector<5x384xf32>
    %cst_26 = arith.constant 0.000000e+00 : f32
    %104 = vector.broadcast %cst_26 : f32 to vector<5x384xf32>
    %105 = arith.select %2, %103, %104 : vector<5x384xi1>, vector<5x384xf32>
    %106 = arith.mulf %105, %105 : vector<5x384xf32>
    %cst_27 = arith.constant dense<0.000000e+00> : vector<5xf32>
    %107 = vector.multi_reduction <add>, %106, %cst_27 [1] : vector<5x384xf32> to vector<5xf32>
    %108 = vector.shape_cast %107 : vector<5xf32> to vector<5x1xf32>
    %cst_28 = arith.constant 0.00392156886 : f32
    %109 = vector.broadcast %cst_28 : f32 to vector<5x1xf32>
    %110 = arith.mulf %108, %109 : vector<5x1xf32>
    %cst_29 = arith.constant 9.99999996E-13 : f32
    %111 = vector.broadcast %cst_29 : f32 to vector<5x1xf32>
    %112 = arith.addf %110, %111 : vector<5x1xf32>
    %113 = math.rsqrt %112 : vector<5x1xf32>
    %114 = vector.broadcast %113 : vector<5x1xf32> to vector<5x384xf32>
    %115 = arith.mulf %105, %114 : vector<5x384xf32>
    %cst_30 = arith.constant -1.000000e+30 : f32
    %116 = vector.broadcast %cst_30 : f32 to vector<5x384xf32>
    %117 = arith.select %2, %115, %116 : vector<5x384xi1>, vector<5x384xf32>
    %c383_i32_31 = arith.constant 383 : i32
    %118 = tpu.dynamic_rotate %117 by %c383_i32_31 dim 1 : vector<5x384xf32>, i32 -> vector<5x384xf32>
    %119 = arith.maximumf %117, %118 : vector<5x384xf32>
    %c382_i32_32 = arith.constant 382 : i32
    %120 = tpu.dynamic_rotate %119 by %c382_i32_32 dim 1 : vector<5x384xf32>, i32 -> vector<5x384xf32>
    %121 = arith.maximumf %119, %120 : vector<5x384xf32>
    %c380_i32_33 = arith.constant 380 : i32
    %122 = tpu.dynamic_rotate %119 by %c380_i32_33 dim 1 : vector<5x384xf32>, i32 -> vector<5x384xf32>
    %123 = arith.maximumf %121, %122 : vector<5x384xf32>
    %c5_i32_34 = arith.constant 5 : i32
    %124 = tpu.dynamic_rotate %123 by %c5_i32_34 dim 1 : vector<5x384xf32>, i32 -> vector<5x384xf32>
    %125 = arith.maximumf %123, %124 : vector<5x384xf32>
    %126 = arith.cmpf oge, %117, %125 : vector<5x384xf32>
    %127 = arith.andi %126, %2 : vector<5x384xi1>
    %128 = arith.extui %127 : vector<5x384xi1> to vector<5x384xi32>
    %129 = arith.sitofp %128 : vector<5x384xi32> to vector<5x384xf32>
    %cst_35 = arith.constant dense<0.000000e+00> : vector<5xf32>
    %130 = vector.multi_reduction <add>, %129, %cst_35 [1] : vector<5x384xf32> to vector<5xf32>
    %131 = vector.shape_cast %130 : vector<5xf32> to vector<5x1xf32>
    %132 = arith.mulf %117, %129 : vector<5x384xf32>
    %cst_36 = arith.constant dense<0.000000e+00> : vector<5xf32>
    %133 = vector.multi_reduction <add>, %132, %cst_36 [1] : vector<5x384xf32> to vector<5xf32>
    %134 = vector.shape_cast %133 : vector<5xf32> to vector<5x1xf32>
    %cst_37 = arith.constant 1.000000e+00 : f32
    %135 = vector.broadcast %cst_37 : f32 to vector<5x1xf32>
    %136 = arith.maximumf %131, %135 : vector<5x1xf32>
    %137 = arith.divf %134, %136 : vector<5x1xf32>
    %cst_38 = arith.constant 5.000000e-01 : f32
    %138 = vector.broadcast %cst_38 : f32 to vector<5x1xf32>
    %139 = arith.mulf %138, %137 : vector<5x1xf32>
    %140 = vector.broadcast %139 : vector<5x1xf32> to vector<5x384xf32>
    %141 = arith.cmpf ogt, %117, %140 : vector<5x384xf32>
    %142 = arith.andi %127, %141 : vector<5x384xi1>
    %143 = arith.extui %142 : vector<5x384xi1> to vector<5x384xi32>
    %144 = arith.sitofp %143 : vector<5x384xi32> to vector<5x384xf32>
    %cst_39 = arith.constant dense<0.000000e+00> : vector<5xf32>
    %145 = vector.multi_reduction <add>, %144, %cst_39 [1] : vector<5x384xf32> to vector<5xf32>
    %146 = vector.shape_cast %145 : vector<5xf32> to vector<5x1xf32>
    %c-1_i32_40 = arith.constant -1 : i32
    %147 = vector.broadcast %c-1_i32_40 : i32 to vector<5x384xi32>
    %148 = arith.select %142, %0, %147 : vector<5x384xi1>, vector<5x384xi32>
    %c1_i32_41 = arith.constant 1 : i32
    %149 = tpu.dynamic_rotate %148 by %c1_i32_41 dim 1 : vector<5x384xi32>, i32 -> vector<5x384xi32>
    %150 = arith.maxsi %148, %149 : vector<5x384xi32>
    %c2_i32_42 = arith.constant 2 : i32
    %151 = tpu.dynamic_rotate %150 by %c2_i32_42 dim 1 : vector<5x384xi32>, i32 -> vector<5x384xi32>
    %152 = arith.maxsi %150, %151 : vector<5x384xi32>
    %c4_i32_43 = arith.constant 4 : i32
    %153 = tpu.dynamic_rotate %152 by %c4_i32_43 dim 1 : vector<5x384xi32>, i32 -> vector<5x384xi32>
    %154 = arith.maxsi %152, %153 : vector<5x384xi32>
    %c8_i32_44 = arith.constant 8 : i32
    %155 = tpu.dynamic_rotate %154 by %c8_i32_44 dim 1 : vector<5x384xi32>, i32 -> vector<5x384xi32>
    %156 = arith.maxsi %154, %155 : vector<5x384xi32>
    %c16_i32_45 = arith.constant 16 : i32
    %157 = tpu.dynamic_rotate %156 by %c16_i32_45 dim 1 : vector<5x384xi32>, i32 -> vector<5x384xi32>
    %158 = arith.maxsi %156, %157 : vector<5x384xi32>
    %c32_i32_46 = arith.constant 32 : i32
    %159 = tpu.dynamic_rotate %158 by %c32_i32_46 dim 1 : vector<5x384xi32>, i32 -> vector<5x384xi32>
    %160 = arith.maxsi %158, %159 : vector<5x384xi32>
    %c64_i32_47 = arith.constant 64 : i32
    %161 = tpu.dynamic_rotate %160 by %c64_i32_47 dim 1 : vector<5x384xi32>, i32 -> vector<5x384xi32>
    %162 = arith.maxsi %160, %161 : vector<5x384xi32>
    %c128_i32_48 = arith.constant 128 : i32
    %163 = tpu.dynamic_rotate %162 by %c128_i32_48 dim 1 : vector<5x384xi32>, i32 -> vector<5x384xi32>
    %c128_i32_49 = arith.constant 128 : i32
    %164 = vector.broadcast %c128_i32_49 : i32 to vector<5x384xi32>
    %165 = arith.cmpi sge, %0, %164 : vector<5x384xi32>
    %166 = arith.maxsi %162, %163 : vector<5x384xi32>
    %167 = arith.select %165, %166, %162 : vector<5x384xi1>, vector<5x384xi32>
    %c1_i32_50 = arith.constant 1 : i32
    %168 = vector.broadcast %c1_i32_50 : i32 to vector<5x384xi32>
    %169 = arith.cmpi sge, %0, %168 : vector<5x384xi32>
    %c1_i32_51 = arith.constant 1 : i32
    %170 = tpu.dynamic_rotate %167 by %c1_i32_51 dim 1 : vector<5x384xi32>, i32 -> vector<5x384xi32>
    %c-1_i32_52 = arith.constant -1 : i32
    %171 = vector.broadcast %c-1_i32_52 : i32 to vector<5x384xi32>
    %172 = arith.select %169, %170, %171 : vector<5x384xi1>, vector<5x384xi32>
    %173 = arith.subi %0, %172 : vector<5x384xi32>
    %174 = arith.sitofp %173 : vector<5x384xi32> to vector<5x384xf32>
    %c0_i32_53 = arith.constant 0 : i32
    %175 = vector.broadcast %c0_i32_53 : i32 to vector<5x384xi32>
    %176 = arith.cmpi sge, %172, %175 : vector<5x384xi32>
    %177 = arith.andi %142, %176 : vector<5x384xi1>
    %cst_54 = arith.constant 1.000000e+00 : f32
    %178 = vector.broadcast %cst_54 : f32 to vector<5x384xf32>
    %179 = arith.divf %178, %174 : vector<5x384xf32>
    %cst_55 = arith.constant 0.000000e+00 : f32
    %180 = vector.broadcast %cst_55 : f32 to vector<5x384xf32>
    %181 = arith.select %177, %179, %180 : vector<5x384xi1>, vector<5x384xf32>
    %cst_56 = arith.constant dense<0.000000e+00> : vector<5xf32>
    %182 = vector.multi_reduction <add>, %181, %cst_56 [1] : vector<5x384xf32> to vector<5xf32>
    %183 = vector.shape_cast %182 : vector<5xf32> to vector<5x1xf32>
    %cst_57 = arith.constant 1.000000e+00 : f32
    %184 = vector.broadcast %cst_57 : f32 to vector<5x1xf32>
    %185 = arith.subf %146, %184 : vector<5x1xf32>
    %cst_58 = arith.constant 1.000000e+00 : f32
    %186 = vector.broadcast %cst_58 : f32 to vector<5x1xf32>
    %187 = arith.maximumf %185, %186 : vector<5x1xf32>
    %cst_59 = arith.constant 1.800000e+03 : f32
    %188 = vector.broadcast %cst_59 : f32 to vector<5x1xf32>
    %189 = arith.mulf %188, %183 : vector<5x1xf32>
    %190 = arith.divf %189, %187 : vector<5x1xf32>
    %191 = arith.subf %96, %190 : vector<5x1xf32>
    %192 = math.absf %191 : vector<5x1xf32>
    %cst_60 = arith.constant 9.99999997E-7 : f32
    %193 = vector.broadcast %cst_60 : f32 to vector<5x1xf32>
    %194 = arith.maximumf %96, %193 : vector<5x1xf32>
    %195 = arith.divf %192, %194 : vector<5x1xf32>
    %cst_61 = arith.constant dense<0.000000e+00> : vector<1xf32>
    %196 = vector.multi_reduction <add>, %195, %cst_61 [0] : vector<5x1xf32> to vector<1xf32>
    %197 = vector.shape_cast %196 : vector<1xf32> to vector<1x1xf32>
    %cst_62 = arith.constant 2.000000e-01 : f32
    %198 = vector.broadcast %cst_62 : f32 to vector<1x1xf32>
    %199 = arith.mulf %197, %198 : vector<1x1xf32>
    %c0_63 = arith.constant 0 : index
    %c0_64 = arith.constant 0 : index
    %200 = vector.load %arg2[%c0_63, %c0_64] : memref<1x1xf32, #tpu.memory_space<vmem>>, vector<1x1xf32>
    tpu.vector_store %arg2[%c0_63, %c0_64], %199 {strides = array<i32>} : memref<1x1xf32, #tpu.memory_space<vmem>>, vector<1x1xf32>,
    return
  }
}

</mosaic_0001>

<llo_original>
// kernel: tpu_custom_call.1
$region0: #{tpu_custom_call.1}
  #allocation0 [shape = 'u32[]', space=smem, size = 0x4, offset = 0x4, fixed_abs, tag = 'smem constant byte address 0x4 - core index']
  #allocation1 [shape = 'u32[144,128]{1,0:T(1,128)}', space=vmem, size = 0x12000, scoped, tag = 'internal scratch']
  %s0 = inlined_call_operand.hbm [shape: f32[5,384], index: 0, kind: input, shape index: {}]
  %s1 = inlined_call_operand.hbm [shape: f32[5,384], index: 1, kind: input, shape index: {}]
  %s2 = inlined_call_operand.hbm [shape: f32[1,1], index: 2, kind: output, shape index: {}]
  %s3 = sld [smem:[#allocation0]]
  $region26: #{tpu_custom_call.1} parent=0
    _
  %s5 = ssub.s32 1, %s3
  %s6 = scalar_select 0, %s5, %s3
  $region1: #{tpu_custom_call.1} parent=0
    #allocation2 [shape = 'u8[12288]{0}', space=vmem, size = 0x3000, scoped, tag = 'input window, operand 0, single buffered']
    #allocation3 [shape = 's32[1]{0}', space=sflag, size = 0x4, scoped, tag = 'scoped memory for tpu_custom_call.1']
    #allocation4 [shape = 's32[1]{0}', space=sflag, size = 0x4, scoped, tag = 'scoped memory for tpu_custom_call.1']
    #allocation5 [shape = 'u8[12288]{0}', space=vmem, size = 0x3000, scoped, tag = 'input window, operand 1, single buffered']
    #allocation6 [shape = 's32[1]{0}', space=sflag, size = 0x4, scoped, tag = 'scoped memory for tpu_custom_call.1']
    #allocation7 [shape = 'u8[512]{0}', space=vmem, size = 0x400, scoped, tag = 'output window, operand 0, single buffered']
    %7 = vsyncpa [#allocation3], 0
    %8 = vsyncpa [#allocation6], 0
    %9 = vsyncpa [#allocation4], 0
    // Predicated region
    $region2: #{tpu_custom_call.1} parent=1 // pred_check
      _
    $region3: #{tpu_custom_call.1} parent=1 // pred_check_branch
      %11 = sbr.rel (0) target = $region5
    $region4: #{tpu_custom_call.1} parent=1 // pred_region
      %s13 = ssub.s32 384, 384
      %14 = vsyncadd [#allocation3], %s13
      %s16 = sshll.u32 [#allocation2], 4
      %s17 = int_to_ptr.vmem [resolvable:$true] %s16
      %19 = dma.hbm_to_vmem [thread:$0]  %s0, 384, %s17, [#allocation3]
    $region5: #{tpu_custom_call.1} parent=1 // pred_fallthru
      _
    // Predicated region
    $region6: #{tpu_custom_call.1} parent=1 // pred_check
      _
    $region7: #{tpu_custom_call.1} parent=1 // pred_check_branch
      %21 = sbr.rel (0) target = $region9
    $region8: #{tpu_custom_call.1} parent=1 // pred_region
      %s23 = ssub.s32 384, 384
      %24 = vsyncadd [#allocation6], %s23
      %s26 = sshll.u32 [#allocation5], 4
      %s27 = int_to_ptr.vmem [resolvable:$true] %s26
      %29 = dma.hbm_to_vmem [thread:$0]  %s1, 384, %s27, [#allocation6]
    $region9: #{tpu_custom_call.1} parent=1 // pred_fallthru
      _
    // Predicated region
    $region10: #{tpu_custom_call.1} parent=1 // pred_check
      _
    $region11: #{tpu_custom_call.1} parent=1 // pred_check_branch
      %31 = sbr.rel (0) target = $region13
    $region12: #{tpu_custom_call.1} parent=1 // pred_region
      %32 = dma.done [#allocation3], 384
    $region13: #{tpu_custom_call.1} parent=1 // pred_fallthru
      _
    // Predicated region
    $region14: #{tpu_custom_call.1} parent=1 // pred_check
      _
    $region15: #{tpu_custom_call.1} parent=1 // pred_check_branch
      %34 = sbr.rel (0) target = $region17
    $region16: #{tpu_custom_call.1} parent=1 // pred_region
      %35 = dma.done [#allocation6], 384
    $region17: #{tpu_custom_call.1} parent=1 // pred_fallthru
      _
    %v36 = vlaneseq
    %v37 = vand.u32 %v36, 127
    %v38 = vadd.s32 %v37, 128
    %v39 = vadd.s32 %v37, 256
    %vm40 = vcmp.lt.s32.totalorder %v37, 256
    %vm41 = vcmp.lt.s32.totalorder %v38, 256
    %vm42 = vcmp.lt.s32.totalorder %v39, 256
    %v43 = vld [vmem:[#allocation2] sm:$0x1f]
    %v44 = vld [vmem:[#allocation2 + $0x8] sm:$0x1f]
    %v45 = vld [vmem:[#allocation2 + $0x10] sm:$0x1f]
    %vm46 = vcmask 1044480
    %v47 = vsel %vm46, %v43, 0.0
    %v48 = vsel %vm46, %v44, 0.0
    %v49 = vadd.f32 %v47, %v48
    %v50 = vsel %vm46, %v45, 0.0
    %v51 = vadd.f32 %v49, %v50
    %52 = vadd.xlane.f32.xlu0 %v51
    %v53 = vpop.xlane.xlu0 %52
    %v54 = vmul.f32 %v53, 0.00390625
    %v55 = vsub.f32 %v43, %v54
    %v56 = vsub.f32 %v44, %v54
    %v57 = vsub.f32 %v45, %v54
    %v58 = vsel %vm40, %v55, 0.0
    %v59 = vsel %vm41, %v56, 0.0
    %v60 = vsel %vm42, %v57, 0.0
    %v61 = vmul.f32 %v58, %v58
    %v62 = vmul.f32 %v59, %v59
    %v63 = vmul.f32 %v60, %v60
    %v64 = vsel %vm46, %v61, 0.0
    %v65 = vsel %vm46, %v62, 0.0
    %v66 = vadd.f32 %v64, %v65
    %v67 = vsel %vm46, %v63, 0.0
    %v68 = vadd.f32 %v66, %v67
    %69 = vadd.xlane.f32.xlu0 %v68
    %v70 = vpop.xlane.xlu0 %69
    %v71 = vmul.f32 %v70, 0.003921569
    %v72 = vadd.f32 %v71, 1e-12
    %v73 = vrsqrt.pop %v72
    %v74 = vmul.f32 %v58, %v73
    %v75 = vmul.f32 %v59, %v73
    %v76 = vmul.f32 %v60, %v73
    %v77 = vsel %vm40, %v74, -1e+30
    %v78 = vsel %vm41, %v75, -1e+30
    %v79 = vsel %vm42, %v76, -1e+30
    %80 = vrot.lane.b32.xlu0 %v77, 127
    %v81 = vpop.permute.xlu0 %80
    %82 = vrot.lane.b32.xlu0 %v78, 127
    %v83 = vpop.permute.xlu0 %82
    %84 = vrot.lane.b32.xlu0 %v79, 127
    %v85 = vpop.permute.xlu0 %84
    %vm86 = vcmp.lt.s32.totalorder %v37, 127
    %v87 = vsel %vm86, %v83, %v85
    %v88 = vsel %vm86, %v81, %v83
    %v89 = vsel %vm86, %v85, %v81
    %v90 = vmax.f32 %v77, %v88
    %v91 = vmax.f32 %v78, %v87
    %v92 = vmax.f32 %v79, %v89
    %93 = vrot.lane.b32.xlu0 %v90, 126
    %v94 = vpop.permute.xlu0 %93
    %95 = vrot.lane.b32.xlu0 %v91, 126
    %v96 = vpop.permute.xlu0 %95
    %97 = vrot.lane.b32.xlu0 %v92, 126
    %v98 = vpop.permute.xlu0 %97
    %vm99 = vcmp.lt.s32.totalorder %v37, 126
    %v100 = vsel %vm99, %v96, %v98
    %v101 = vsel %vm99, %v94, %v96
    %v102 = vsel %vm99, %v98, %v94
    %v103 = vmax.f32 %v90, %v101
    %v104 = vmax.f32 %v91, %v100
    %v105 = vmax.f32 %v92, %v102
    %106 = vrot.lane.b32.xlu0 %v90, 124
    %v107 = vpop.permute.xlu0 %106
    %108 = vrot.lane.b32.xlu0 %v91, 124
    %v109 = vpop.permute.xlu0 %108
    %110 = vrot.lane.b32.xlu0 %v92, 124
    %v111 = vpop.permute.xlu0 %110
    %vm112 = vcmp.lt.s32.totalorder %v37, 124
    %v113 = vsel %vm112, %v109, %v111
    %v114 = vsel %vm112, %v107, %v109
    %v115 = vsel %vm112, %v111, %v107
    %v116 = vmax.f32 %v103, %v114
    %v117 = vmax.f32 %v104, %v113
    %v118 = vmax.f32 %v105, %v115
    %119 = vrot.lane.b32.xlu0 %v116, 5
    %v120 = vpop.permute.xlu0 %119
    %121 = vrot.lane.b32.xlu0 %v117, 5
    %v122 = vpop.permute.xlu0 %121
    %123 = vrot.lane.b32.xlu0 %v118, 5
    %v124 = vpop.permute.xlu0 %123
    %vm125 = vcmp.lt.s32.totalorder %v37, 5
    %v126 = vsel %vm125, %v122, %v124
    %v127 = vsel %vm125, %v120, %v122
    %v128 = vsel %vm125, %v124, %v120
    %v129 = vmax.f32 %v116, %v128
    %v130 = vmax.f32 %v117, %v127
    %v131 = vmax.f32 %v118, %v126
    %vm132 = vcmp.ge.f32.partialorder %v77, %v129
    %vm133 = vcmp.ge.f32.partialorder %v78, %v130
    %vm134 = vcmp.ge.f32.partialorder %v79, %v131
    %vm135 = vmand %vm132, %vm40
    %vm136 = vmand %vm133, %vm41
    %vm137 = vmand %vm134, %vm42
    %v138 = vsel %vm135, 1, 0
    %v139 = vsel %vm136, 1, 0
    %v140 = vsel %vm137, 1, 0
    %v141 = vcvt.s32.f32 %v138
    %v142 = vcvt.s32.f32 %v139
    %v143 = vcvt.s32.f32 %v140
    %v144 = vsel %vm46, %v141, 0.0
    %v145 = vsel %vm46, %v142, 0.0
    %v146 = vadd.f32 %v144, %v145
    %v147 = vsel %vm46, %v143, 0.0
    %v148 = vadd.f32 %v146, %v147
    %149 = vadd.xlane.f32.xlu0 %v148
    %v150 = vpop.xlane.xlu0 %149
    %v151 = vmul.f32 %v77, %v141
    %v152 = vmul.f32 %v78, %v142
    %v153 = vmul.f32 %v79, %v143
    %v154 = vsel %vm46, %v151, 0.0
    %v155 = vsel %vm46, %v152, 0.0
    %v156 = vadd.f32 %v154, %v155
    %v157 = vsel %vm46, %v153, 0.0
    %v158 = vadd.f32 %v156, %v157
    %159 = vadd.xlane.f32.xlu0 %v158
    %v160 = vpop.xlane.xlu0 %159
    %v161 = vmax.f32 %v150, 1.0
    %v162 = vrcp.pop %v161
    %v163 = vmul.f32 %v160, %v162
    %v164 = vmul.f32 %v163, 0.5
    %vm165 = vcmp.gt.f32.partialorder %v77, %v164
    %vm166 = vcmp.gt.f32.partialorder %v78, %v164
    %vm167 = vcmp.gt.f32.partialorder %v79, %v164
    %vm168 = vmand %vm135, %vm165
    %vm169 = vmand %vm136, %vm166
    %vm170 = vmand %vm137, %vm167
    %v171 = vsel %vm168, 1, 0
    %v172 = vsel %vm169, 1, 0
    %v173 = vsel %vm170, 1, 0
    %v174 = vcvt.s32.f32 %v171
    %v175 = vcvt.s32.f32 %v172
    %v176 = vcvt.s32.f32 %v173
    %v177 = vsel %vm46, %v174, 0.0
    %v178 = vsel %vm46, %v175, 0.0
    %v179 = vadd.f32 %v177, %v178
    %v180 = vsel %vm46, %v176, 0.0
    %v181 = vadd.f32 %v179, %v180
    %182 = vadd.xlane.f32.xlu0 %v181
    %v183 = vpop.xlane.xlu0 %182
    %v184 = vsel %vm168, %v37, 4294967295
    %v185 = vsel %vm169, %v38, 4294967295
    %v186 = vsel %vm170, %v39, 4294967295
    %187 = vrot.lane.b32.xlu0 %v184, 1
    %v188 = vpop.permute.xlu0 %187
    %189 = vrot.lane.b32.xlu0 %v185, 1
    %v190 = vpop.permute.xlu0 %189
    %191 = vrot.lane.b32.xlu0 %v186, 1
    %v192 = vpop.permute.xlu0 %191
    %vm193 = vcmp.lt.s32.totalorder %v37, 1
    %v194 = vsel %vm193, %v190, %v192
    %v195 = vsel %vm193, %v188, %v190
    %v196 = vsel %vm193, %v192, %v188
    %vm197 = vcmp.gt.s32.totalorder %v184, %v196
    %v198 = vsel %vm197, %v184, %v196
    %vm199 = vcmp.gt.s32.totalorder %v185, %v195
    %v200 = vsel %vm199, %v185, %v195
    %vm201 = vcmp.gt.s32.totalorder %v186, %v194
    %v202 = vsel %vm201, %v186, %v194
    %203 = vrot.lane.b32.xlu0 %v198, 2
    %v204 = vpop.permute.xlu0 %203
    %205 = vrot.lane.b32.xlu0 %v200, 2
    %v206 = vpop.permute.xlu0 %205
    %207 = vrot.lane.b32.xlu0 %v202, 2
    %v208 = vpop.permute.xlu0 %207
    %vm209 = vcmp.lt.s32.totalorder %v37, 2
    %v210 = vsel %vm209, %v206, %v208
    %v211 = vsel %vm209, %v204, %v206
    %v212 = vsel %vm209, %v208, %v204
    %vm213 = vcmp.gt.s32.totalorder %v198, %v212
    %v214 = vsel %vm213, %v198, %v212
    %vm215 = vcmp.gt.s32.totalorder %v200, %v211
    %v216 = vsel %vm215, %v200, %v211
    %vm217 = vcmp.gt.s32.totalorder %v202, %v210
    %v218 = vsel %vm217, %v202, %v210
    %219 = vrot.lane.b32.xlu0 %v214, 4
    %v220 = vpop.permute.xlu0 %219
    %221 = vrot.lane.b32.xlu0 %v216, 4
    %v222 = vpop.permute.xlu0 %221
    %223 = vrot.lane.b32.xlu0 %v218, 4
    %v224 = vpop.permute.xlu0 %223
    %vm225 = vcmp.lt.s32.totalorder %v37, 4
    %v226 = vsel %vm225, %v222, %v224
    %v227 = vsel %vm225, %v220, %v222
    %v228 = vsel %vm225, %v224, %v220
    %vm229 = vcmp.gt.s32.totalorder %v214, %v228
    %v230 = vsel %vm229, %v214, %v228
    %vm231 = vcmp.gt.s32.totalorder %v216, %v227
    %v232 = vsel %vm231, %v216, %v227
    %vm233 = vcmp.gt.s32.totalorder %v218, %v226
    %v234 = vsel %vm233, %v218, %v226
    %235 = vrot.lane.b32.xlu0 %v230, 8
    %v236 = vpop.permute.xlu0 %235
    %237 = vrot.lane.b32.xlu0 %v232, 8
    %v238 = vpop.permute.xlu0 %237
    %239 = vrot.lane.b32.xlu0 %v234, 8
    %v240 = vpop.permute.xlu0 %239
    %vm241 = vcmp.lt.s32.totalorder %v37, 8
    %v242 = vsel %vm241, %v238, %v240
    %v243 = vsel %vm241, %v236, %v238
    %v244 = vsel %vm241, %v240, %v236
    %vm245 = vcmp.gt.s32.totalorder %v230, %v244
    %v246 = vsel %vm245, %v230, %v244
    %vm247 = vcmp.gt.s32.totalorder %v232, %v243
    %v248 = vsel %vm247, %v232, %v243
    %vm249 = vcmp.gt.s32.totalorder %v234, %v242
    %v250 = vsel %vm249, %v234, %v242
    %251 = vrot.lane.b32.xlu0 %v246, 16
    %v252 = vpop.permute.xlu0 %251
    %253 = vrot.lane.b32.xlu0 %v248, 16
    %v254 = vpop.permute.xlu0 %253
    %255 = vrot.lane.b32.xlu0 %v250, 16
    %v256 = vpop.permute.xlu0 %255
    %vm257 = vcmp.lt.s32.totalorder %v37, 16
    %v258 = vsel %vm257, %v254, %v256
    %v259 = vsel %vm257, %v252, %v254
    %v260 = vsel %vm257, %v256, %v252
    %vm261 = vcmp.gt.s32.totalorder %v246, %v260
    %v262 = vsel %vm261, %v246, %v260
    %vm263 = vcmp.gt.s32.totalorder %v248, %v259
    %v264 = vsel %vm263, %v248, %v259
    %vm265 = vcmp.gt.s32.totalorder %v250, %v258
    %v266 = vsel %vm265, %v250, %v258
    %267 = vrot.lane.b32.xlu0 %v262, 32
    %v268 = vpop.permute.xlu0 %267
    %269 = vrot.lane.b32.xlu0 %v264, 32
    %v270 = vpop.permute.xlu0 %269
    %271 = vrot.lane.b32.xlu0 %v266, 32
    %v272 = vpop.permute.xlu0 %271
    %vm273 = vcmp.lt.s32.totalorder %v37, 32
    %v274 = vsel %vm273, %v270, %v272
    %v275 = vsel %vm273, %v268, %v270
    %v276 = vsel %vm273, %v272, %v268
    %vm277 = vcmp.gt.s32.totalorder %v262, %v276
    %v278 = vsel %vm277, %v262, %v276
    %vm279 = vcmp.gt.s32.totalorder %v264, %v275
    %v280 = vsel %vm279, %v264, %v275
    %vm281 = vcmp.gt.s32.totalorder %v266, %v274
    %v282 = vsel %vm281, %v266, %v274
    %283 = vrot.lane.b32.xlu0 %v278, 64
    %v284 = vpop.permute.xlu0 %283
    %285 = vrot.lane.b32.xlu0 %v280, 64
    %v286 = vpop.permute.xlu0 %285
    %287 = vrot.lane.b32.xlu0 %v282, 64
    %v288 = vpop.permute.xlu0 %287
    %vm289 = vcmp.lt.s32.totalorder %v37, 64
    %v290 = vsel %vm289, %v286, %v288
    %v291 = vsel %vm289, %v284, %v286
    %v292 = vsel %vm289, %v288, %v284
    %vm293 = vcmp.gt.s32.totalorder %v278, %v292
    %v294 = vsel %vm293, %v278, %v292
    %vm295 = vcmp.gt.s32.totalorder %v280, %v291
    %v296 = vsel %vm295, %v280, %v291
    %vm297 = vcmp.gt.s32.totalorder %v282, %v290
    %v298 = vsel %vm297, %v282, %v290
    %vm299 = vcmp.ge.s32.totalorder %v37, 128
    %vm300 = vcmp.ge.s32.totalorder %v38, 128
    %vm301 = vcmp.ge.s32.totalorder %v39, 128
    %vm302 = vcmp.gt.s32.totalorder %v294, %v298
    %v303 = vsel %vm302, %v294, %v298
    %vm304 = vcmp.gt.s32.totalorder %v296, %v294
    %v305 = vsel %vm304, %v296, %v294
    %vm306 = vcmp.gt.s32.totalorder %v298, %v296
    %v307 = vsel %vm306, %v298, %v296
    %v308 = vsel %vm299, %v303, %v294
    %v309 = vsel %vm300, %v305, %v296
    %v310 = vsel %vm301, %v307, %v298
    %vm311 = vcmp.ge.s32.totalorder %v37, 1
    %vm312 = vcmp.ge.s32.totalorder %v38, 1
    %vm313 = vcmp.ge.s32.totalorder %v39, 1
    %314 = vrot.lane.b32.xlu0 %v308, 1
    %v315 = vpop.permute.xlu0 %314
    %316 = vrot.lane.b32.xlu0 %v309, 1
    %v317 = vpop.permute.xlu0 %316
    %318 = vrot.lane.b32.xlu0 %v310, 1
    %v319 = vpop.permute.xlu0 %318
    %v320 = vsel %vm193, %v317, %v319
    %v321 = vsel %vm193, %v315, %v317
    %v322 = vsel %vm193, %v319, %v315
    %v323 = vsel %vm311, %v322, 4294967295
    %v324 = vsel %vm312, %v321, 4294967295
    %v325 = vsel %vm313, %v320, 4294967295
    %v326 = vsub.s32 %v37, %v323
    %v327 = vsub.s32 %v38, %v324
    %v328 = vsub.s32 %v39, %v325
    %v329 = vcvt.s32.f32 %v326
    %v330 = vcvt.s32.f32 %v327
    %v331 = vcvt.s32.f32 %v328
    %vm332 = vcmp.ge.s32.totalorder %v323, 0
    %vm333 = vcmp.ge.s32.totalorder %v324, 0
    %vm334 = vcmp.ge.s32.totalorder %v325, 0
    %vm335 = vmand %vm168, %vm332
    %vm336 = vmand %vm169, %vm333
    %vm337 = vmand %vm170, %vm334
    %v338 = vrcp.pop %v329
    %v339 = vmul.f32 1.0, %v338
    %v340 = vrcp.pop %v330
    %v341 = vmul.f32 1.0, %v340
    %v342 = vrcp.pop %v331
    %v343 = vmul.f32 1.0, %v342
    %v344 = vsel %vm335, %v339, 0.0
    %v345 = vsel %vm336, %v341, 0.0
    %v346 = vsel %vm337, %v343, 0.0
    %v347 = vsel %vm46, %v344, 0.0
    %v348 = vsel %vm46, %v345, 0.0
    %v349 = vadd.f32 %v347, %v348
    %v350 = vsel %vm46, %v346, 0.0
    %v351 = vadd.f32 %v349, %v350
    %352 = vadd.xlane.f32.xlu0 %v351
    %v353 = vpop.xlane.xlu0 %352
    %v354 = vsub.f32 %v183, 1.0
    %v355 = vmax.f32 %v354, 1.0
    %v356 = vmul.f32 %v353, 1800.0
    %v357 = vrcp.pop %v355
    %v358 = vmul.f32 %v356, %v357
    %v359 = vld [vmem:[#allocation5] sm:$0x1f]
    %v360 = vld [vmem:[#allocation5 + $0x8] sm:$0x1f]
    %v361 = vld [vmem:[#allocation5 + $0x10] sm:$0x1f]
    %v362 = vsel %vm46, %v359, 0.0
    %v363 = vsel %vm46, %v360, 0.0
    %v364 = vadd.f32 %v362, %v363
    %v365 = vsel %vm46, %v361, 0.0
    %v366 = vadd.f32 %v364, %v365
    %367 = vadd.xlane.f32.xlu0 %v366
    %v368 = vpop.xlane.xlu0 %367
    %v369 = vmul.f32 %v368, 0.00390625
    %v370 = vsub.f32 %v359, %v369
    %v371 = vsub.f32 %v360, %v369
    %v372 = vsub.f32 %v361, %v369
    %v373 = vsel %vm40, %v370, 0.0
    %v374 = vsel %vm41, %v371, 0.0
    %v375 = vsel %vm42, %v372, 0.0
    %v376 = vmul.f32 %v373, %v373
    %v377 = vmul.f32 %v374, %v374
    %v378 = vmul.f32 %v375, %v375
    %v379 = vsel %vm46, %v376, 0.0
    %v380 = vsel %vm46, %v377, 0.0
    %v381 = vadd.f32 %v379, %v380
    %v382 = vsel %vm46, %v378, 0.0
    %v383 = vadd.f32 %v381, %v382
    %384 = vadd.xlane.f32.xlu0 %v383
    %v385 = vpop.xlane.xlu0 %384
    %v386 = vmul.f32 %v385, 0.003921569
    %v387 = vadd.f32 %v386, 1e-12
    %v388 = vrsqrt.pop %v387
    %v389 = vmul.f32 %v373, %v388
    %v390 = vmul.f32 %v374, %v388
    %v391 = vmul.f32 %v375, %v388
    %v392 = vsel %vm40, %v389, -1e+30
    %v393 = vsel %vm41, %v390, -1e+30
    %v394 = vsel %vm42, %v391, -1e+30
    %395 = vrot.lane.b32.xlu0 %v392, 127
    %v396 = vpop.permute.xlu0 %395
    %397 = vrot.lane.b32.xlu0 %v393, 127
    %v398 = vpop.permute.xlu0 %397
    %399 = vrot.lane.b32.xlu0 %v394, 127
    %v400 = vpop.permute.xlu0 %399
    %v401 = vsel %vm86, %v398, %v400
    %v402 = vsel %vm86, %v396, %v398
    %v403 = vsel %vm86, %v400, %v396
    %v404 = vmax.f32 %v392, %v402
    %v405 = vmax.f32 %v393, %v401
    %v406 = vmax.f32 %v394, %v403
    %407 = vrot.lane.b32.xlu0 %v404, 126
    %v408 = vpop.permute.xlu0 %407
    %409 = vrot.lane.b32.xlu0 %v405, 126
    %v410 = vpop.permute.xlu0 %409
    %411 = vrot.lane.b32.xlu0 %v406, 126
    %v412 = vpop.permute.xlu0 %411
    %v413 = vsel %vm99, %v410, %v412
    %v414 = vsel %vm99, %v408, %v410
    %v415 = vsel %vm99, %v412, %v408
    %v416 = vmax.f32 %v404, %v414
    %v417 = vmax.f32 %v405, %v413
    %v418 = vmax.f32 %v406, %v415
    %419 = vrot.lane.b32.xlu0 %v404, 124
    %v420 = vpop.permute.xlu0 %419
    %421 = vrot.lane.b32.xlu0 %v405, 124
    %v422 = vpop.permute.xlu0 %421
    %423 = vrot.lane.b32.xlu0 %v406, 124
    %v424 = vpop.permute.xlu0 %423
    %v425 = vsel %vm112, %v422, %v424
    %v426 = vsel %vm112, %v420, %v422
    %v427 = vsel %vm112, %v424, %v420
    %v428 = vmax.f32 %v416, %v426
    %v429 = vmax.f32 %v417, %v425
    %v430 = vmax.f32 %v418, %v427
    %431 = vrot.lane.b32.xlu0 %v428, 5
    %v432 = vpop.permute.xlu0 %431
    %433 = vrot.lane.b32.xlu0 %v429, 5
    %v434 = vpop.permute.xlu0 %433
    %435 = vrot.lane.b32.xlu0 %v430, 5
    %v436 = vpop.permute.xlu0 %435
    %v437 = vsel %vm125, %v434, %v436
    %v438 = vsel %vm125, %v432, %v434
    %v439 = vsel %vm125, %v436, %v432
    %v440 = vmax.f32 %v428, %v439
    %v441 = vmax.f32 %v429, %v438
    %v442 = vmax.f32 %v430, %v437
    %vm443 = vcmp.ge.f32.partialorder %v392, %v440
    %vm444 = vcmp.ge.f32.partialorder %v393, %v441
    %vm445 = vcmp.ge.f32.partialorder %v394, %v442
    %vm446 = vmand %vm443, %vm40
    %vm447 = vmand %vm444, %vm41
    %vm448 = vmand %vm445, %vm42
    %v449 = vsel %vm446, 1, 0
    %v450 = vsel %vm447, 1, 0
    %v451 = vsel %vm448, 1, 0
    %v452 = vcvt.s32.f32 %v449
    %v453 = vcvt.s32.f32 %v450
    %v454 = vcvt.s32.f32 %v451
    %v455 = vsel %vm46, %v452, 0.0
    %v456 = vsel %vm46, %v453, 0.0
    %v457 = vadd.f32 %v455, %v456
    %v458 = vsel %vm46, %v454, 0.0
    %v459 = vadd.f32 %v457, %v458
    %460 = vadd.xlane.f32.xlu0 %v459
    %v461 = vpop.xlane.xlu0 %460
    %v462 = vmul.f32 %v392, %v452
    %v463 = vmul.f32 %v393, %v453
    %v464 = vmul.f32 %v394, %v454
    %v465 = vsel %vm46, %v462, 0.0
    %v466 = vsel %vm46, %v463, 0.0
    %v467 = vadd.f32 %v465, %v466
    %v468 = vsel %vm46, %v464, 0.0
    %v469 = vadd.f32 %v467, %v468
    %470 = vadd.xlane.f32.xlu0 %v469
    %v471 = vpop.xlane.xlu0 %470
    %v472 = vmax.f32 %v461, 1.0
    %v473 = vrcp.pop %v472
    %v474 = vmul.f32 %v471, %v473
    %v475 = vmul.f32 %v474, 0.5
    %vm476 = vcmp.gt.f32.partialorder %v392, %v475
    %vm477 = vcmp.gt.f32.partialorder %v393, %v475
    %vm478 = vcmp.gt.f32.partialorder %v394, %v475
    %vm479 = vmand %vm446, %vm476
    %vm480 = vmand %vm447, %vm477
    %vm481 = vmand %vm448, %vm478
    %v482 = vsel %vm479, 1, 0
    %v483 = vsel %vm480, 1, 0
    %v484 = vsel %vm481, 1, 0
    %v485 = vcvt.s32.f32 %v482
    %v486 = vcvt.s32.f32 %v483
    %v487 = vcvt.s32.f32 %v484
    %v488 = vsel %vm46, %v485, 0.0
    %v489 = vsel %vm46, %v486, 0.0
    %v490 = vadd.f32 %v488, %v489
    %v491 = vsel %vm46, %v487, 0.0
    %v492 = vadd.f32 %v490, %v491
    %493 = vadd.xlane.f32.xlu0 %v492
    %v494 = vpop.xlane.xlu0 %493
    %v495 = vsel %vm479, %v37, 4294967295
    %v496 = vsel %vm480, %v38, 4294967295
    %v497 = vsel %vm481, %v39, 4294967295
    %498 = vrot.lane.b32.xlu0 %v495, 1
    %v499 = vpop.permute.xlu0 %498
    %500 = vrot.lane.b32.xlu0 %v496, 1
    %v501 = vpop.permute.xlu0 %500
    %502 = vrot.lane.b32.xlu0 %v497, 1
    %v503 = vpop.permute.xlu0 %502
    %v504 = vsel %vm193, %v501, %v503
    %v505 = vsel %vm193, %v499, %v501
    %v506 = vsel %vm193, %v503, %v499
    %vm507 = vcmp.gt.s32.totalorder %v495, %v506
    %v508 = vsel %vm507, %v495, %v506
    %vm509 = vcmp.gt.s32.totalorder %v496, %v505
    %v510 = vsel %vm509, %v496, %v505
    %vm511 = vcmp.gt.s32.totalorder %v497, %v504
    %v512 = vsel %vm511, %v497, %v504
    %513 = vrot.lane.b32.xlu0 %v508, 2
    %v514 = vpop.permute.xlu0 %513
    %515 = vrot.lane.b32.xlu0 %v510, 2
    %v516 = vpop.permute.xlu0 %515
    %517 = vrot.lane.b32.xlu0 %v512, 2
    %v518 = vpop.permute.xlu0 %517
    %v519 = vsel %vm209, %v516, %v518
    %v520 = vsel %vm209, %v514, %v516
    %v521 = vsel %vm209, %v518, %v514
    %vm522 = vcmp.gt.s32.totalorder %v508, %v521
    %v523 = vsel %vm522, %v508, %v521
    %vm524 = vcmp.gt.s32.totalorder %v510, %v520
    %v525 = vsel %vm524, %v510, %v520
    %vm526 = vcmp.gt.s32.totalorder %v512, %v519
    %v527 = vsel %vm526, %v512, %v519
    %528 = vrot.lane.b32.xlu0 %v523, 4
    %v529 = vpop.permute.xlu0 %528
    %530 = vrot.lane.b32.xlu0 %v525, 4
    %v531 = vpop.permute.xlu0 %530
    %532 = vrot.lane.b32.xlu0 %v527, 4
    %v533 = vpop.permute.xlu0 %532
    %v534 = vsel %vm225, %v531, %v533
    %v535 = vsel %vm225, %v529, %v531
    %v536 = vsel %vm225, %v533, %v529
    %vm537 = vcmp.gt.s32.totalorder %v523, %v536
    %v538 = vsel %vm537, %v523, %v536
    %vm539 = vcmp.gt.s32.totalorder %v525, %v535
    %v540 = vsel %vm539, %v525, %v535
    %vm541 = vcmp.gt.s32.totalorder %v527, %v534
    %v542 = vsel %vm541, %v527, %v534
    %543 = vrot.lane.b32.xlu0 %v538, 8
    %v544 = vpop.permute.xlu0 %543
    %545 = vrot.lane.b32.xlu0 %v540, 8
    %v546 = vpop.permute.xlu0 %545
    %547 = vrot.lane.b32.xlu0 %v542, 8
    %v548 = vpop.permute.xlu0 %547
    %v549 = vsel %vm241, %v546, %v548
    %v550 = vsel %vm241, %v544, %v546
    %v551 = vsel %vm241, %v548, %v544
    %vm552 = vcmp.gt.s32.totalorder %v538, %v551
    %v553 = vsel %vm552, %v538, %v551
    %vm554 = vcmp.gt.s32.totalorder %v540, %v550
    %v555 = vsel %vm554, %v540, %v550
    %vm556 = vcmp.gt.s32.totalorder %v542, %v549
    %v557 = vsel %vm556, %v542, %v549
    %558 = vrot.lane.b32.xlu0 %v553, 16
    %v559 = vpop.permute.xlu0 %558
    %560 = vrot.lane.b32.xlu0 %v555, 16
    %v561 = vpop.permute.xlu0 %560
    %562 = vrot.lane.b32.xlu0 %v557, 16
    %v563 = vpop.permute.xlu0 %562
    %v564 = vsel %vm257, %v561, %v563
    %v565 = vsel %vm257, %v559, %v561
    %v566 = vsel %vm257, %v563, %v559
    %vm567 = vcmp.gt.s32.totalorder %v553, %v566
    %v568 = vsel %vm567, %v553, %v566
    %vm569 = vcmp.gt.s32.totalorder %v555, %v565
    %v570 = vsel %vm569, %v555, %v565
    %vm571 = vcmp.gt.s32.totalorder %v557, %v564
    %v572 = vsel %vm571, %v557, %v564
    %573 = vrot.lane.b32.xlu0 %v568, 32
    %v574 = vpop.permute.xlu0 %573
    %575 = vrot.lane.b32.xlu0 %v570, 32
    %v576 = vpop.permute.xlu0 %575
    %577 = vrot.lane.b32.xlu0 %v572, 32
    %v578 = vpop.permute.xlu0 %577
    %v579 = vsel %vm273, %v576, %v578
    %v580 = vsel %vm273, %v574, %v576
    %v581 = vsel %vm273, %v578, %v574
    %vm582 = vcmp.gt.s32.totalorder %v568, %v581
    %v583 = vsel %vm582, %v568, %v581
    %vm584 = vcmp.gt.s32.totalorder %v570, %v580
    %v585 = vsel %vm584, %v570, %v580
    %vm586 = vcmp.gt.s32.totalorder %v572, %v579
    %v587 = vsel %vm586, %v572, %v579
    %588 = vrot.lane.b32.xlu0 %v583, 64
    %v589 = vpop.permute.xlu0 %588
    %590 = vrot.lane.b32.xlu0 %v585, 64
    %v591 = vpop.permute.xlu0 %590
    %592 = vrot.lane.b32.xlu0 %v587, 64
    %v593 = vpop.permute.xlu0 %592
    %v594 = vsel %vm289, %v591, %v593
    %v595 = vsel %vm289, %v589, %v591
    %v596 = vsel %vm289, %v593, %v589
    %vm597 = vcmp.gt.s32.totalorder %v583, %v596
    %v598 = vsel %vm597, %v583, %v596
    %vm599 = vcmp.gt.s32.totalorder %v585, %v595
    %v600 = vsel %vm599, %v585, %v595
    %vm601 = vcmp.gt.s32.totalorder %v587, %v594
    %v602 = vsel %vm601, %v587, %v594
    %vm603 = vcmp.gt.s32.totalorder %v598, %v602
    %v604 = vsel %vm603, %v598, %v602
    %vm605 = vcmp.gt.s32.totalorder %v600, %v598
    %v606 = vsel %vm605, %v600, %v598
    %vm607 = vcmp.gt.s32.totalorder %v602, %v600
    %v608 = vsel %vm607, %v602, %v600
    %v609 = vsel %vm299, %v604, %v598
    %v610 = vsel %vm300, %v606, %v600
    %v611 = vsel %vm301, %v608, %v602
    %612 = vrot.lane.b32.xlu0 %v609, 1
    %v613 = vpop.permute.xlu0 %612
    %614 = vrot.lane.b32.xlu0 %v610, 1
    %v615 = vpop.permute.xlu0 %614
    %616 = vrot.lane.b32.xlu0 %v611, 1
    %v617 = vpop.permute.xlu0 %616
    %v618 = vsel %vm193, %v615, %v617
    %v619 = vsel %vm193, %v613, %v615
    %v620 = vsel %vm193, %v617, %v613
    %v621 = vsel %vm311, %v620, 4294967295
    %v622 = vsel %vm312, %v619, 4294967295
    %v623 = vsel %vm313, %v618, 4294967295
    %v624 = vsub.s32 %v37, %v621
    %v625 = vsub.s32 %v38, %v622
    %v626 = vsub.s32 %v39, %v623
    %v627 = vcvt.s32.f32 %v624
    %v628 = vcvt.s32.f32 %v625
    %v629 = vcvt.s32.f32 %v626
    %vm630 = vcmp.ge.s32.totalorder %v621, 0
    %vm631 = vcmp.ge.s32.totalorder %v622, 0
    %vm632 = vcmp.ge.s32.totalorder %v623, 0
    %vm633 = vmand %vm479, %vm630
    %vm634 = vmand %vm480, %vm631
    %vm635 = vmand %vm481, %vm632
    %v636 = vrcp.pop %v627
    %v637 = vmul.f32 1.0, %v636
    %v638 = vrcp.pop %v628
    %v639 = vmul.f32 1.0, %v638
    %v640 = vrcp.pop %v629
    %v641 = vmul.f32 1.0, %v640
    %v642 = vsel %vm633, %v637, 0.0
    %v643 = vsel %vm634, %v639, 0.0
    %v644 = vsel %vm635, %v641, 0.0
    %v645 = vsel %vm46, %v642, 0.0
    %v646 = vsel %vm46, %v643, 0.0
    %v647 = vadd.f32 %v645, %v646
    %v648 = vsel %vm46, %v644, 0.0
    %v649 = vadd.f32 %v647, %v648
    %650 = vadd.xlane.f32.xlu0 %v649
    %v651 = vpop.xlane.xlu0 %650
    %v652 = vsub.f32 %v494, 1.0
    %v653 = vmax.f32 %v652, 1.0
    %v654 = vmul.f32 %v651, 1800.0
    %v655 = vrcp.pop %v653
    %v656 = vmul.f32 %v654, %v655
    %v657 = vsub.f32 %v358, %v656
    %v658 = vand.u32 2147483647, %v657
    %v659 = vmax.f32 %v358, 1e-06
    %v660 = vrcp.pop %v659
    %v661 = vmul.f32 %v658, %v660
    %v662 = vsel %vm46, %v661, 0.0
    %v663 = vrot.slane %v662, 4
    %v664 = vadd.f32 %v662, %v663
    %v665 = vrot.slane %v664, 2
    %v666 = vadd.f32 %v664, %v665
    %v667 = vrot.slane %v666, 1
    %v668 = vadd.f32 %v666, %v667
    %v669 = vmul.f32 %v668, 0.2
    %vm670 = vcmask 0
    %671 = vst.msk [vmem:[#allocation7] sm:$0x1] %vm670, %v669
    // Predicated region
    $region18: #{tpu_custom_call.1} parent=1 // pred_check
      _
    $region19: #{tpu_custom_call.1} parent=1 // pred_check_branch
      %673 = sbr.rel (0) target = $region21
    $region20: #{tpu_custom_call.1} parent=1 // pred_region
      %s675 = ssub.s32 16, 16
      %676 = vsyncadd [#allocation4], %s675
      %s678 = sshll.u32 [#allocation7], 4
      %s679 = int_to_ptr.vmem [resolvable:$true] %s678
      %681 = dma.vmem_to_hbm [thread:$0]  %s679, 16, %s2, [#allocation4]
    $region21: #{tpu_custom_call.1} parent=1 // pred_fallthru
      _
    // Predicated region
    $region22: #{tpu_custom_call.1} parent=1 // pred_check
      _
    $region23: #{tpu_custom_call.1} parent=1 // pred_check_branch
      %683 = sbr.rel (0) target = $region25
    $region24: #{tpu_custom_call.1} parent=1 // pred_region
      %684 = dma.done [#allocation4], 16
    $region25: #{tpu_custom_call.1} parent=1 // pred_fallthru
      _
    %685 = vsyncpa [#allocation3], 1
    %686 = vsyncpa [#allocation6], 1
    %687 = vsyncpa [#allocation4], 1

</llo_original>
